<compile_context>
chip_gen: v7x
topology: tpu7x:2x2x1
jax: 0.10.0
libtpu: 0.0.40
codegen_flags: <defaults>
</compile_context>

<pallas_src>
import jax
import jax.numpy as jnp
from jax.experimental import pallas as pl
from jax.experimental.pallas import tpu as pltpu


def mlp_kernel(x_ref, w1_ref, b1_ref, w2_ref, b2_ref, w3_ref, b3_ref, o_ref):
    # One batch tile of the whole 3-layer MLP.  x arrives in f32 and is cast
    # to the weight dtype (bf16) here, just before the first MXU dot; the cast
    # runs on the VPU and hides under MXU slack.  Matmuls accumulate in f32;
    # bias-add / ReLU run on the VPU in f32.
    x = x_ref[...].astype(w1_ref.dtype)                 # f32 -> bf16 [tile, D0]

    h1 = jnp.dot(x, w1_ref[...], preferred_element_type=jnp.float32) + b1_ref[...]
    h1 = jnp.maximum(h1, 0.0).astype(w2_ref.dtype)      # back to bf16 for MXU

    h2 = jnp.dot(h1, w2_ref[...], preferred_element_type=jnp.float32) + b2_ref[...]
    h2 = jnp.maximum(h2, 0.0).astype(w3_ref.dtype)

    out = jnp.dot(h2, w3_ref[...], preferred_element_type=jnp.float32) + b3_ref[...]
    o_ref[...] = out.astype(o_ref.dtype)


def _round_up(n, m):
    return ((n + m - 1) // m) * m


def network_forward(x, params, *, batch_tile=4096, compute_dtype=jnp.bfloat16,
                    out_dtype=jnp.float32, min_grid_steps=2):
    """Run the Network forward pass with a Pallas kernel.

    x: [B, D0] float32
    params: dict with w1 [D0,D1], b1 [1,D1], w2 [D1,D2], b2 [1,D2],
            w3 [D2,D3], b3 [1,D3]  (all float32)
    batch_tile: target rows per grid step (rounded to a multiple of 16).
    min_grid_steps: lower bound on grid steps when B is big enough to split
        (keeps both v7x TensorCores busy; ~free on v5e/v6e).

    Note: weights/activations run in bf16 with f32 accumulation, which changes
    numerics slightly vs. the f32 PyTorch Network (documented tradeoff).
    """
    B, D0 = x.shape
    D1 = params["w1"].shape[1]
    D2 = params["w2"].shape[1]
    D3 = params["w3"].shape[1]

    if B == 0:  # guard: empty batch would make tile/grid degenerate
        return jnp.zeros((0, D3), dtype=out_dtype)

    # M-tile: multiple of 16 (bf16 sublane granule, also a multiple of 8 for
    # the f32 x-block), capped by the batch.  Large default amortizes MXU
    # fill/drain since K/N are tiny and M is the only knob.
    tile = min(_round_up(batch_tile, 16), _round_up(B, 16))
    if min_grid_steps > 1 and B > 16:
        # Ensure >=2 grid steps so the "parallel" batch axis can land on both
        # v7x TensorCores and DMAs pipeline against compute.
        tile = min(tile, _round_up(pl.cdiv(B, min_grid_steps), 16))
    grid = (pl.cdiv(B, tile),)

    # No whole-array pad / astype of x: the kernel reads f32 directly and
    # Pallas masks the partial trailing block when B % tile != 0.
    # bf16 weights (MXU-native); biases stay f32 for the f32 add/ReLU path.
    w1 = params["w1"].astype(compute_dtype)
    w2 = params["w2"].astype(compute_dtype)
    w3 = params["w3"].astype(compute_dtype)
    b1 = params["b1"].astype(jnp.float32)
    b2 = params["b2"].astype(jnp.float32)
    b3 = params["b3"].astype(jnp.float32)

    # Weights/biases are tiny: give every grid step the full tensor
    # (block_shape == full array shape satisfies the (8,128) rule; constant
    # index map keeps them resident, no re-DMA per step).
    full = lambda shape: pl.BlockSpec(shape, lambda i: (0,) * len(shape))

    out = pl.pallas_call(
        mlp_kernel,
        out_shape=jax.ShapeDtypeStruct((B, D3), out_dtype),
        grid_spec=pltpu.PrefetchScalarGridSpec(
            num_scalar_prefetch=0,
            grid=grid,
            in_specs=[
                pl.BlockSpec((tile, D0), lambda i: (i, 0)),   # x tile (f32)
                full((D0, D1)), full((1, D1)),                # fc1
                full((D1, D2)), full((1, D2)),                # fc2
                full((D2, D3)), full((1, D3)),                # fc3
            ],
            out_specs=pl.BlockSpec((tile, D3), lambda i: (i, 0)),
        ),
        compiler_params=pltpu.CompilerParams(
            dimension_semantics=("parallel",),
            vmem_limit_bytes=32 * 1024 * 1024,
        ),
    )(x, w1, b1, w2, b2, w3, b3)

    return out


def init_params(key, layer_numbers):
    """Deterministic init mimicking nn.Linear default (U(-1/sqrt(fan_in), +))."""
    params = {}
    ks = jax.random.split(key, 6)
    dims = layer_numbers
    for li in range(3):
        fan_in, fan_out = dims[li], dims[li + 1]
        bound = 1.0 / jnp.sqrt(jnp.float32(fan_in))
        w = jax.random.uniform(ks[2 * li], (fan_in, fan_out),
                               minval=-bound, maxval=bound, dtype=jnp.float32)
        b = jax.random.uniform(ks[2 * li + 1], (1, fan_out),
                               minval=-bound, maxval=bound, dtype=jnp.float32)
        params[f"w{li + 1}"] = w
        params[f"b{li + 1}"] = b
    return params


def network_forward_ref(x, params, compute_dtype=jnp.bfloat16):
    """Pure-JAX reference using the same bf16-weights / f32-accumulate recipe."""
    w1 = params["w1"].astype(compute_dtype)
    w2 = params["w2"].astype(compute_dtype)
    w3 = params["w3"].astype(compute_dtype)
    h1 = jnp.dot(x.astype(compute_dtype), w1,
                 preferred_element_type=jnp.float32) + params["b1"]
    h1 = jnp.maximum(h1, 0.0).astype(compute_dtype)
    h2 = jnp.dot(h1, w2, preferred_element_type=jnp.float32) + params["b2"]
    h2 = jnp.maximum(h2, 0.0).astype(compute_dtype)
    return jnp.dot(h2, w3, preferred_element_type=jnp.float32) + params["b3"]


if __name__ == "__main__":
    # Small shapes consistent with the module: layer_numbers = [32, 64, 64, 16]
    layer_numbers = [32, 64, 64, 16]

    key = jax.random.PRNGKey(0)
    kx, kp, kx2, kx3 = jax.random.split(key, 4)
    params = init_params(kp, layer_numbers)

    # Case 1: tiny batch (B=8 < 16-row tile -> single, partial, masked block).
    batch = 8
    x = jax.random.normal(kx, (batch, layer_numbers[0]), dtype=jnp.float32)
    out = jax.block_until_ready(network_forward(x, params))
    ref = network_forward_ref(x, params)
    assert out.shape == (batch, layer_numbers[-1])
    assert jnp.allclose(out, ref, atol=1e-2, rtol=1e-2)

    # Case 2: non-divisible batch with a small forced tile -> multi-step grid
    # with a partial trailing block (no whole-array pad in the wrapper).
    batch2 = 40
    x2 = jax.random.normal(kx2, (batch2, layer_numbers[0]), dtype=jnp.float32)
    out2 = jax.block_until_ready(network_forward(x2, params, batch_tile=16))
    ref2 = network_forward_ref(x2, params)
    assert out2.shape == (batch2, layer_numbers[-1])
    assert jnp.allclose(out2, ref2, atol=1e-2, rtol=1e-2)

    # Case 3: default batch_tile path with the >=2-grid-step cap exercised
    # (B=200 -> tile=round_up(100,16)=112, grid=2, second block partial).
    batch3 = 200
    x3 = jax.random.normal(kx3, (batch3, layer_numbers[0]), dtype=jnp.float32)
    out3 = jax.block_until_ready(network_forward(x3, params))
    ref3 = network_forward_ref(x3, params)
    assert out3.shape == (batch3, layer_numbers[-1])
    assert jnp.allclose(out3, ref3, atol=1e-2, rtol=1e-2)

    print("KERNEL_OK")
</pallas_src>

<mosaic_0001>
module attributes {stable_mosaic.version = 11 : i64} {
  func.func @mlp_kernel(%arg0: i32, %arg1: memref<16x32xf32, #tpu.memory_space<vmem>>, %arg2: memref<32x64xbf16, #tpu.memory_space<vmem>>, %arg3: memref<1x64xf32, #tpu.memory_space<vmem>>, %arg4: memref<64x64xbf16, #tpu.memory_space<vmem>>, %arg5: memref<1x64xf32, #tpu.memory_space<vmem>>, %arg6: memref<64x16xbf16, #tpu.memory_space<vmem>>, %arg7: memref<1x16xf32, #tpu.memory_space<vmem>>, %arg8: memref<16x16xf32, #tpu.memory_space<vmem>>) attributes {dimension_semantics = [#tpu.dimension_semantics<parallel>], iteration_bounds = array<i64: 1>, scalar_prefetch = 0 : i64, scratch_operands = 0 : i64, tpu.core_type = #tpu.core_type<tc>, window_params = [{transform_indices = @transform_0, window_bounds = array<i64: 16, 32>}, {pipeline_mode = #tpu.pipeline_mode<synchronous>, transform_indices = @transform_1, window_bounds = array<i64: 32, 64>}, {pipeline_mode = #tpu.pipeline_mode<synchronous>, transform_indices = @transform_2, window_bounds = array<i64: 1, 64>}, {pipeline_mode = #tpu.pipeline_mode<synchronous>, transform_indices = @transform_3, window_bounds = array<i64: 64, 64>}, {pipeline_mode = #tpu.pipeline_mode<synchronous>, transform_indices = @transform_4, window_bounds = array<i64: 1, 64>}, {pipeline_mode = #tpu.pipeline_mode<synchronous>, transform_indices = @transform_5, window_bounds = array<i64: 64, 16>}, {pipeline_mode = #tpu.pipeline_mode<synchronous>, transform_indices = @transform_6, window_bounds = array<i64: 1, 16>}, {transform_indices = @transform_7, window_bounds = array<i64: 16, 16>}]} {
    %c0 = arith.constant 0 : index
    %c0_0 = arith.constant 0 : index
    %0 = vector.load %arg1[%c0, %c0_0] : memref<16x32xf32, #tpu.memory_space<vmem>>, vector<16x32xf32>
    %1 = arith.truncf %0 : vector<16x32xf32> to vector<16x32xbf16>
    %c0_1 = arith.constant 0 : index
    %c0_2 = arith.constant 0 : index
    %2 = vector.load %arg2[%c0_1, %c0_2] : memref<32x64xbf16, #tpu.memory_space<vmem>>, vector<32x64xbf16>
    %cst = arith.constant dense<0.000000e+00> : vector<16x64xf32>
    %3 = tpu.matmul %1, %2, %cst {dimension_numbers = #tpu.dot_dimension_numbers<[1], [0], [0], [1], [0, 0, 1, 1], [], []>} : vector<16x32xbf16>, vector<32x64xbf16>, vector<16x64xf32> -> vector<16x64xf32>
    %c0_3 = arith.constant 0 : index
    %c0_4 = arith.constant 0 : index
    %4 = vector.load %arg3[%c0_3, %c0_4] : memref<1x64xf32, #tpu.memory_space<vmem>>, vector<1x64xf32>
    %5 = vector.broadcast %4 : vector<1x64xf32> to vector<16x64xf32>
    %6 = arith.addf %3, %5 : vector<16x64xf32>
    %cst_5 = arith.constant 0.000000e+00 : f32
    %7 = vector.broadcast %cst_5 : f32 to vector<16x64xf32>
    %8 = arith.maximumf %6, %7 : vector<16x64xf32>
    %9 = arith.truncf %8 : vector<16x64xf32> to vector<16x64xbf16>
    %c0_6 = arith.constant 0 : index
    %c0_7 = arith.constant 0 : index
    %10 = vector.load %arg4[%c0_6, %c0_7] : memref<64x64xbf16, #tpu.memory_space<vmem>>, vector<64x64xbf16>
    %cst_8 = arith.constant dense<0.000000e+00> : vector<16x64xf32>
    %11 = tpu.matmul %9, %10, %cst_8 {dimension_numbers = #tpu.dot_dimension_numbers<[1], [0], [0], [1], [0, 0, 1, 1], [], []>} : vector<16x64xbf16>, vector<64x64xbf16>, vector<16x64xf32> -> vector<16x64xf32>
    %c0_9 = arith.constant 0 : index
    %c0_10 = arith.constant 0 : index
    %12 = vector.load %arg5[%c0_9, %c0_10] : memref<1x64xf32, #tpu.memory_space<vmem>>, vector<1x64xf32>
    %13 = vector.broadcast %12 : vector<1x64xf32> to vector<16x64xf32>
    %14 = arith.addf %11, %13 : vector<16x64xf32>
    %cst_11 = arith.constant 0.000000e+00 : f32
    %15 = vector.broadcast %cst_11 : f32 to vector<16x64xf32>
    %16 = arith.maximumf %14, %15 : vector<16x64xf32>
    %17 = arith.truncf %16 : vector<16x64xf32> to vector<16x64xbf16>
    %c0_12 = arith.constant 0 : index
    %c0_13 = arith.constant 0 : index
    %18 = vector.load %arg6[%c0_12, %c0_13] : memref<64x16xbf16, #tpu.memory_space<vmem>>, vector<64x16xbf16>
    %cst_14 = arith.constant dense<0.000000e+00> : vector<16x16xf32>
    %19 = tpu.matmul %17, %18, %cst_14 {dimension_numbers = #tpu.dot_dimension_numbers<[1], [0], [0], [1], [0, 0, 1, 1], [], []>} : vector<16x64xbf16>, vector<64x16xbf16>, vector<16x16xf32> -> vector<16x16xf32>
    %c0_15 = arith.constant 0 : index
    %c0_16 = arith.constant 0 : index
    %20 = vector.load %arg7[%c0_15, %c0_16] : memref<1x16xf32, #tpu.memory_space<vmem>>, vector<1x16xf32>
    %21 = vector.broadcast %20 : vector<1x16xf32> to vector<16x16xf32>
    %22 = arith.addf %19, %21 : vector<16x16xf32>
    %c0_17 = arith.constant 0 : index
    %c0_18 = arith.constant 0 : index
    %23 = vector.load %arg8[%c0_17, %c0_18] : memref<16x16xf32, #tpu.memory_space<vmem>>, vector<16x16xf32>
    tpu.vector_store %arg8[%c0_17, %c0_18], %22 {strides = array<i32>} : memref<16x16xf32, #tpu.memory_space<vmem>>, vector<16x16xf32>,
    return
  }
  func.func @transform_0(%arg0: i32) -> (i32, i32) {
    %c0_i32 = arith.constant 0 : i32
    %c0_i32_0 = arith.constant 0 : i32
    return %arg0, %c0_i32 : i32, i32
  }
  func.func @transform_1(%arg0: i32) -> (i32, i32) {
    %c0_i32 = arith.constant 0 : i32
    %c0_i32_0 = arith.constant 0 : i32
    %c0_i32_1 = arith.constant 0 : i32
    return %c0_i32, %c0_i32_0 : i32, i32
  }
  func.func @transform_2(%arg0: i32) -> (i32, i32) {
    %c0_i32 = arith.constant 0 : i32
    %c0_i32_0 = arith.constant 0 : i32
    %c0_i32_1 = arith.constant 0 : i32
    return %c0_i32, %c0_i32_0 : i32, i32
  }
  func.func @transform_3(%arg0: i32) -> (i32, i32) {
    %c0_i32 = arith.constant 0 : i32
    %c0_i32_0 = arith.constant 0 : i32
    %c0_i32_1 = arith.constant 0 : i32
    return %c0_i32, %c0_i32_0 : i32, i32
  }
  func.func @transform_4(%arg0: i32) -> (i32, i32) {
    %c0_i32 = arith.constant 0 : i32
    %c0_i32_0 = arith.constant 0 : i32
    %c0_i32_1 = arith.constant 0 : i32
    return %c0_i32, %c0_i32_0 : i32, i32
  }
  func.func @transform_5(%arg0: i32) -> (i32, i32) {
    %c0_i32 = arith.constant 0 : i32
    %c0_i32_0 = arith.constant 0 : i32
    %c0_i32_1 = arith.constant 0 : i32
    return %c0_i32, %c0_i32_0 : i32, i32
  }
  func.func @transform_6(%arg0: i32) -> (i32, i32) {
    %c0_i32 = arith.constant 0 : i32
    %c0_i32_0 = arith.constant 0 : i32
    %c0_i32_1 = arith.constant 0 : i32
    return %c0_i32, %c0_i32_0 : i32, i32
  }
  func.func @transform_7(%arg0: i32) -> (i32, i32) {
    %c0_i32 = arith.constant 0 : i32
    %c0_i32_0 = arith.constant 0 : i32
    return %arg0, %c0_i32 : i32, i32
  }
}

</mosaic_0001>

<llo_original>
// kernel: tpu_custom_call.1
$region0: #{tpu_custom_call.1}
  #allocation0 [shape = 'u32[]', space=smem, size = 0x4, offset = 0x4, fixed_abs, tag = 'smem constant byte address 0x4 - core index']
  #allocation1 [shape = 'u32[144,128]{1,0:T(1,128)}', space=vmem, size = 0x12000, scoped, tag = 'internal scratch']
  %s0 = inlined_call_operand.hbm [shape: f32[8,32], index: 0, kind: input, shape index: {}]
  %s1 = inlined_call_operand.vmem [shape: bf16[32,64], index: 1, kind: input, shape index: {}]
  %s2 = inlined_call_operand.vmem [shape: f32[1,64], index: 2, kind: input, shape index: {}]
  %s3 = inlined_call_operand.vmem [shape: bf16[64,64], index: 3, kind: input, shape index: {}]
  %s4 = inlined_call_operand.vmem [shape: f32[1,64], index: 4, kind: input, shape index: {}]
  %s5 = inlined_call_operand.vmem [shape: bf16[64,16], index: 5, kind: input, shape index: {}]
  %s6 = inlined_call_operand.vmem [shape: f32[1,16], index: 6, kind: input, shape index: {}]
  %s7 = inlined_call_operand.hbm [shape: f32[8,16], index: 7, kind: output, shape index: {}]
  %s8 = sld [smem:[#allocation0]]
  $region42: #{tpu_custom_call.1} parent=0
    _
  %s10 = ssub.s32 1, %s8
  %s11 = scalar_select 0, %s10, %s8
  $region1: #{tpu_custom_call.1} parent=0
    #allocation2 [shape = 'u8[8192]{0}', space=vmem, size = 0x2000, scoped, tag = 'input window, operand 0, single buffered']
    #allocation3 [shape = 's32[1]{0}', space=sflag, size = 0x4, scoped, tag = 'scoped memory for tpu_custom_call.1']
    #allocation4 [shape = 's32[1]{0}', space=sflag, size = 0x4, scoped, tag = 'scoped memory for tpu_custom_call.1']
    #allocation5 [shape = 'u8[8192]{0}', space=vmem, size = 0x2000, scoped, tag = 'output window, operand 0, single buffered']
    %12 = vsyncpa [#allocation3], 0
    %13 = vsyncpa [#allocation4], 0
    // Predicated region
    $region2: #{tpu_custom_call.1} parent=1 // pred_check
      _
    $region3: #{tpu_custom_call.1} parent=1 // pred_check_branch
      %15 = sbr.rel (0) target = $region5
    $region4: #{tpu_custom_call.1} parent=1 // pred_region
      %s17 = ssub.s32 256, 128
      %18 = vsyncadd [#allocation3], %s17
      %s19 = sshll.u32 [#allocation2], 4
      %s20 = int_to_ptr.vmem [resolvable:$true] %s19
      %25 = dma.hbm_to_vmem [thread:$0]  %s0, 128, %s20, [#allocation3], 128, 128, 8
    $region5: #{tpu_custom_call.1} parent=1 // pred_fallthru
      _
    // Predicated region
    $region6: #{tpu_custom_call.1} parent=1 // pred_check
      _
    $region7: #{tpu_custom_call.1} parent=1 // pred_check_branch
      %27 = sbr.rel (0) target = $region9
    $region8: #{tpu_custom_call.1} parent=1 // pred_region
      _
    $region9: #{tpu_custom_call.1} parent=1 // pred_fallthru
      _
    // Predicated region
    $region10: #{tpu_custom_call.1} parent=1 // pred_check
      _
    $region11: #{tpu_custom_call.1} parent=1 // pred_check_branch
      %29 = sbr.rel (0) target = $region13
    $region12: #{tpu_custom_call.1} parent=1 // pred_region
      _
    $region13: #{tpu_custom_call.1} parent=1 // pred_fallthru
      _
    // Predicated region
    $region14: #{tpu_custom_call.1} parent=1 // pred_check
      _
    $region15: #{tpu_custom_call.1} parent=1 // pred_check_branch
      %31 = sbr.rel (0) target = $region17
    $region16: #{tpu_custom_call.1} parent=1 // pred_region
      _
    $region17: #{tpu_custom_call.1} parent=1 // pred_fallthru
      _
    // Predicated region
    $region18: #{tpu_custom_call.1} parent=1 // pred_check
      _
    $region19: #{tpu_custom_call.1} parent=1 // pred_check_branch
      %33 = sbr.rel (0) target = $region21
    $region20: #{tpu_custom_call.1} parent=1 // pred_region
      _
    $region21: #{tpu_custom_call.1} parent=1 // pred_fallthru
      _
    // Predicated region
    $region22: #{tpu_custom_call.1} parent=1 // pred_check
      _
    $region23: #{tpu_custom_call.1} parent=1 // pred_check_branch
      %35 = sbr.rel (0) target = $region25
    $region24: #{tpu_custom_call.1} parent=1 // pred_region
      _
    $region25: #{tpu_custom_call.1} parent=1 // pred_fallthru
      _
    // Predicated region
    $region26: #{tpu_custom_call.1} parent=1 // pred_check
      _
    $region27: #{tpu_custom_call.1} parent=1 // pred_check_branch
      %37 = sbr.rel (0) target = $region29
    $region28: #{tpu_custom_call.1} parent=1 // pred_region
      _
    $region29: #{tpu_custom_call.1} parent=1 // pred_fallthru
      _
    // Predicated region
    $region30: #{tpu_custom_call.1} parent=1 // pred_check
      _
    $region31: #{tpu_custom_call.1} parent=1 // pred_check_branch
      %39 = sbr.rel (0) target = $region33
    $region32: #{tpu_custom_call.1} parent=1 // pred_region
      %40 = dma.done [#allocation3], 256
    $region33: #{tpu_custom_call.1} parent=1 // pred_fallthru
      _
    %v42 = vld [vmem:[#allocation2] sm:$0xff]
    %v43 = vld [vmem:[#allocation2 + $0x8] sm:$0xff]
    %v44 = vpack.c.bf16 %v43, %v42
    %v45 = vld [vmem:[%s1] sm:$0xf]
    %v46 = vld [vmem:[%s1 + $0x4] sm:$0xf]
    %v47 = vld [vmem:[%s1 + $0x8] sm:$0xf]
    %v48 = vld [vmem:[%s1 + $0xc] sm:$0xf]
    %v49 = vld [vmem:[%s2] sm:$0x1]
    %v51 = vlaneseq
    %v52 = vshrl.u32 %v51, 7
    %v53 = vsub.s32 0, %v52
    %v54 = vrot.slane %v49, %v53
    %v60 = vunpack.c.l.b16 %v45
    %v61 = vunpack.c.l.b16 %v46
    %v62 = vunpack.c.l.b16 %v47
    %v63 = vunpack.c.l.b16 %v48
    %v64 = vpack.c.b16 %v61, %v60
    %v65 = vpack.c.b16 %v63, %v62
    %vm68 = vcmask 261120
    %v70 = vsel %vm68, %v44, 0
    %72 = vmatprep.subr.bf16.mxu0 0
    %73 = vmatpush1.bf16.msra.mxu0 %v64
    %74 = vmatprep.subr.bf16.mxu0 0
    %75 = vmatpush1.bf16.msra.mxu0 %v65
    %76 = vmatprep.subr.bf16.mxu0 0
    %77 = vmatpush1.bf16.msra.mxu0 0
    %78 = vmatprep.subr.bf16.mxu0 0
    %79 = vmatpush1.bf16.msra.mxu0 0
    %80 = vmatprep.subr.bf16.mxu0 0
    %81 = vmatpush1.bf16.msra.mxu0 0
    %82 = vmatprep.subr.bf16.mxu0 0
    %83 = vmatpush1.bf16.msra.mxu0 0
    %84 = vmatprep.subr.bf16.mxu0 0
    %85 = vmatpush1.bf16.msra.mxu0 0
    %86 = vmatprep.subr.bf16.mxu0 0
    %87 = vmatpush1.bf16.msra.mxu0 0
    %88 = vmatprep.subr.bf16.mxu0 0
    %89 = vmatpush1.bf16.msra.mxu0 0
    %90 = vmatprep.subr.bf16.mxu0 0
    %91 = vmatpush1.bf16.msra.mxu0 0
    %92 = vmatprep.subr.bf16.mxu0 0
    %93 = vmatpush1.bf16.msra.mxu0 0
    %94 = vmatprep.subr.bf16.mxu0 0
    %95 = vmatpush1.bf16.msra.mxu0 0
    %96 = vmatprep.subr.bf16.mxu0 0
    %97 = vmatpush1.bf16.msra.mxu0 0
    %98 = vmatprep.subr.bf16.mxu0 0
    %99 = vmatpush1.bf16.msra.mxu0 0
    %100 = vmatprep.subr.bf16.mxu0 0
    %101 = vmatpush1.bf16.msra.mxu0 0
    %102 = vmatprep.subr.bf16.mxu0 0
    %103 = vmatpush1.bf16.msra.mxu0 0
    %104 = vmatprep.mubr.bf16.mxu0 0
    %105 = vmatmul.mubr.bf16.gmra.mrb[0].mxu0 %v70
    %v106 = vpop.f32.mrb[0].mxu0
    %v107 = vadd.f32 %v54, %v106
    %v108 = vpop.f32.mrb[0].mxu0
    %v109 = vpop.f32.mrb[0].mxu0
    %v110 = vadd.f32 %v54, %v109
    %v111 = vpop.f32.mrb[0].mxu0
    %112 = vdwg.mxu0
    %v113 = vmax.f32 %v107, 0.0
    %v114 = vmax.f32 %v110, 0.0
    %v115 = vpack.c.bf16 %v114, %v113
    %v116 = vld [vmem:[%s3] sm:$0xf]
    %v117 = vld [vmem:[%s3 + $0x4] sm:$0xf]
    %v118 = vld [vmem:[%s3 + $0x8] sm:$0xf]
    %v119 = vld [vmem:[%s3 + $0xc] sm:$0xf]
    %v120 = vld [vmem:[%s3 + $0x10] sm:$0xf]
    %v121 = vld [vmem:[%s3 + $0x14] sm:$0xf]
    %v122 = vld [vmem:[%s3 + $0x18] sm:$0xf]
    %v123 = vld [vmem:[%s3 + $0x1c] sm:$0xf]
    %v124 = vld [vmem:[%s4] sm:$0x1]
    %v126 = vlaneseq
    %v127 = vshrl.u32 %v126, 7
    %v128 = vsub.s32 0, %v127
    %v129 = vrot.slane %v124, %v128
    %v139 = vunpack.c.l.b16 %v116
    %v140 = vunpack.c.l.b16 %v117
    %v141 = vunpack.c.l.b16 %v118
    %v142 = vunpack.c.l.b16 %v119
    %v143 = vunpack.c.l.b16 %v120
    %v144 = vunpack.c.l.b16 %v121
    %v145 = vunpack.c.l.b16 %v122
    %v146 = vunpack.c.l.b16 %v123
    %v147 = vpack.c.b16 %v140, %v139
    %v148 = vpack.c.b16 %v142, %v141
    %v149 = vpack.c.b16 %v144, %v143
    %v150 = vpack.c.b16 %v146, %v145
    %vm155 = vcmask 523264
    %v157 = vsel %vm155, %v115, 0
    %159 = vmatprep.subr.bf16.mxu0 0
    %160 = vmatpush1.bf16.msra.mxu0 %v147
    %161 = vmatprep.subr.bf16.mxu0 0
    %162 = vmatpush1.bf16.msra.mxu0 %v148
    %163 = vmatprep.subr.bf16.mxu0 0
    %164 = vmatpush1.bf16.msra.mxu0 %v149
    %165 = vmatprep.subr.bf16.mxu0 0
    %166 = vmatpush1.bf16.msra.mxu0 %v150
    %167 = vmatprep.subr.bf16.mxu0 0
    %168 = vmatpush1.bf16.msra.mxu0 0
    %169 = vmatprep.subr.bf16.mxu0 0
    %170 = vmatpush1.bf16.msra.mxu0 0
    %171 = vmatprep.subr.bf16.mxu0 0
    %172 = vmatpush1.bf16.msra.mxu0 0
    %173 = vmatprep.subr.bf16.mxu0 0
    %174 = vmatpush1.bf16.msra.mxu0 0
    %175 = vmatprep.subr.bf16.mxu0 0
    %176 = vmatpush1.bf16.msra.mxu0 0
    %177 = vmatprep.subr.bf16.mxu0 0
    %178 = vmatpush1.bf16.msra.mxu0 0
    %179 = vmatprep.subr.bf16.mxu0 0
    %180 = vmatpush1.bf16.msra.mxu0 0
    %181 = vmatprep.subr.bf16.mxu0 0
    %182 = vmatpush1.bf16.msra.mxu0 0
    %183 = vmatprep.subr.bf16.mxu0 0
    %184 = vmatpush1.bf16.msra.mxu0 0
    %185 = vmatprep.subr.bf16.mxu0 0
    %186 = vmatpush1.bf16.msra.mxu0 0
    %187 = vmatprep.subr.bf16.mxu0 0
    %188 = vmatpush1.bf16.msra.mxu0 0
    %189 = vmatprep.subr.bf16.mxu0 0
    %190 = vmatpush1.bf16.msra.mxu0 0
    %191 = vmatprep.mubr.bf16.mxu0 0
    %192 = vmatmul.mubr.bf16.gmra.mrb[0].mxu0 %v157
    %v193 = vpop.f32.mrb[0].mxu0
    %v194 = vadd.f32 %v129, %v193
    %v195 = vpop.f32.mrb[0].mxu0
    %v196 = vpop.f32.mrb[0].mxu0
    %v197 = vadd.f32 %v129, %v196
    %v198 = vpop.f32.mrb[0].mxu0
    %199 = vdwg.mxu0
    %v200 = vmax.f32 %v194, 0.0
    %v201 = vmax.f32 %v197, 0.0
    %v202 = vpack.c.bf16 %v201, %v200
    %v203 = vld [vmem:[%s5] sm:$0xf]
    %v204 = vld [vmem:[%s5 + $0x4] sm:$0xf]
    %v205 = vld [vmem:[%s5 + $0x8] sm:$0xf]
    %v206 = vld [vmem:[%s5 + $0xc] sm:$0xf]
    %v207 = vld [vmem:[%s5 + $0x10] sm:$0xf]
    %v208 = vld [vmem:[%s5 + $0x14] sm:$0xf]
    %v209 = vld [vmem:[%s5 + $0x18] sm:$0xf]
    %v210 = vld [vmem:[%s5 + $0x1c] sm:$0xf]
    %v211 = vld [vmem:[%s6] sm:$0x1]
    %v213 = vlaneseq
    %v214 = vshrl.u32 %v213, 7
    %v215 = vsub.s32 0, %v214
    %v216 = vrot.slane %v211, %v215
    %v226 = vunpack.c.l.b16 %v203
    %v227 = vunpack.c.l.b16 %v204
    %v228 = vunpack.c.l.b16 %v205
    %v229 = vunpack.c.l.b16 %v206
    %v230 = vunpack.c.l.b16 %v207
    %v231 = vunpack.c.l.b16 %v208
    %v232 = vunpack.c.l.b16 %v209
    %v233 = vunpack.c.l.b16 %v210
    %v234 = vpack.c.b16 %v227, %v226
    %v235 = vpack.c.b16 %v229, %v228
    %v236 = vpack.c.b16 %v231, %v230
    %v237 = vpack.c.b16 %v233, %v232
    %v243 = vsel %vm155, %v202, 0
    %245 = vmatprep.subr.bf16.mxu0 0
    %246 = vmatpush1.bf16.msra.mxu0 %v234
    %247 = vmatprep.subr.bf16.mxu0 0
    %248 = vmatpush1.bf16.msra.mxu0 %v235
    %249 = vmatprep.subr.bf16.mxu0 0
    %250 = vmatpush1.bf16.msra.mxu0 %v236
    %251 = vmatprep.subr.bf16.mxu0 0
    %252 = vmatpush1.bf16.msra.mxu0 %v237
    %253 = vmatprep.subr.bf16.mxu0 0
    %254 = vmatpush1.bf16.msra.mxu0 0
    %255 = vmatprep.subr.bf16.mxu0 0
    %256 = vmatpush1.bf16.msra.mxu0 0
    %257 = vmatprep.subr.bf16.mxu0 0
    %258 = vmatpush1.bf16.msra.mxu0 0
    %259 = vmatprep.subr.bf16.mxu0 0
    %260 = vmatpush1.bf16.msra.mxu0 0
    %261 = vmatprep.subr.bf16.mxu0 0
    %262 = vmatpush1.bf16.msra.mxu0 0
    %263 = vmatprep.subr.bf16.mxu0 0
    %264 = vmatpush1.bf16.msra.mxu0 0
    %265 = vmatprep.subr.bf16.mxu0 0
    %266 = vmatpush1.bf16.msra.mxu0 0
    %267 = vmatprep.subr.bf16.mxu0 0
    %268 = vmatpush1.bf16.msra.mxu0 0
    %269 = vmatprep.subr.bf16.mxu0 0
    %270 = vmatpush1.bf16.msra.mxu0 0
    %271 = vmatprep.subr.bf16.mxu0 0
    %272 = vmatpush1.bf16.msra.mxu0 0
    %273 = vmatprep.subr.bf16.mxu0 0
    %274 = vmatpush1.bf16.msra.mxu0 0
    %275 = vmatprep.subr.bf16.mxu0 0
    %276 = vmatpush1.bf16.msra.mxu0 0
    %277 = vmatprep.mubr.bf16.mxu0 0
    %278 = vmatmul.mubr.bf16.gmra.mrb[0].mxu0 %v243
    %v279 = vpop.f32.mrb[0].mxu0
    %v280 = vadd.f32 %v216, %v279
    %v281 = vpop.f32.mrb[0].mxu0
    %v282 = vpop.f32.mrb[0].mxu0
    %v283 = vadd.f32 %v216, %v282
    %v284 = vpop.f32.mrb[0].mxu0
    %285 = vdwg.mxu0
    %vm286 = vcmask 130048
    %287 = vst.msk [vmem:[#allocation5] sm:$0xff] %vm286, %v280
    %288 = vst.msk [vmem:[#allocation5 + $0x8] sm:$0xff] %vm286, %v283
    // Predicated region
    $region34: #{tpu_custom_call.1} parent=1 // pred_check
      _
    $region35: #{tpu_custom_call.1} parent=1 // pred_check_branch
      %290 = sbr.rel (0) target = $region37
    $region36: #{tpu_custom_call.1} parent=1 // pred_region
      %s292 = ssub.s32 256, 128
      %293 = vsyncadd [#allocation4], %s292
      %s294 = sshll.u32 [#allocation5], 4
      %s295 = int_to_ptr.vmem [resolvable:$true] %s294
      %300 = dma.vmem_to_hbm [thread:$0]  %s295, 128, %s7, [#allocation4], 128, 128, 8
    $region37: #{tpu_custom_call.1} parent=1 // pred_fallthru
      _
    // Predicated region
    $region38: #{tpu_custom_call.1} parent=1 // pred_check
      _
    $region39: #{tpu_custom_call.1} parent=1 // pred_check_branch
      %302 = sbr.rel (0) target = $region41
    $region40: #{tpu_custom_call.1} parent=1 // pred_region
      %303 = dma.done [#allocation4], 256
    $region41: #{tpu_custom_call.1} parent=1 // pred_fallthru
      _
    %304 = vsyncpa [#allocation3], 1
    %305 = vsyncpa [#allocation4], 1

</llo_original>
